<compile_context>
chip_gen: v7x
topology: tpu7x:2x2x1
jax: 0.10.0
libtpu: 0.0.40
codegen_flags: <defaults>
</compile_context>

<pallas_src>
import jax
import jax.numpy as jnp
from jax import lax
from jax.experimental import pallas as pl
from jax.experimental.pallas import tpu as pltpu

_LANE = 128


def _round_up(x, m):
    return ((x + m - 1) // m) * m


def _tile_caps():
    """Per-generation tile caps: (row_cap, hw_cap, vmem_limit_bytes)."""
    try:
        vmem = int(pltpu.get_tpu_info().vmem_capacity_bytes)
    except Exception:
        vmem = 64 * 1024 * 1024  # conservative default: assume v7x
    if vmem >= 128 * 1024 * 1024:
        # v5e / v6e (128 MiB VMEM): ~16 MiB f32 input blocks.
        return 1024, 4096, 96 * 1024 * 1024
    # v7x (64 MiB VMEM): ~8 MiB f32 input blocks.
    return 1024, 2048, 40 * 1024 * 1024


def _make_kernel(hw, hw_tile, grid_k):
    """Build the kernel closure for static (hw, hw_tile, grid_k)."""
    n_chunks = hw_tile // _LANE                 # chunks per full HW tile
    rem = hw - (grid_k - 1) * hw_tile           # valid lanes in the last HW step
    full_last = rem // _LANE
    tail_valid = rem % _LANE                    # valid lanes in the partial chunk
    chunks_last = full_last + (1 if tail_valid else 0)
    inv_hw = 1.0 / float(hw)

    def kernel(x_ref, o_ref, max_acc, sum_acc):
        k = pl.program_id(1)

        @pl.when(k == 0)
        def _init():
            max_acc[...] = jnp.full_like(max_acc, -jnp.inf)
            sum_acc[...] = jnp.zeros_like(sum_acc)

        def fold(num_chunks, tail):
            # Stream 128-lane chunks straight from the input block ref:
            # cast in-flight, mask only the final partial chunk (if any),
            # fold with elementwise VPU ops into one 128-lane column.
            pm = None
            ps = None
            for j in range(num_chunks):
                xj = x_ref[:, j * _LANE:(j + 1) * _LANE].astype(jnp.float32)
                if tail and j == num_chunks - 1:
                    lane = lax.broadcasted_iota(jnp.int32, xj.shape, 1)
                    valid = lane < tail
                    xm = jnp.where(valid, xj, -jnp.inf)
                    xs = jnp.where(valid, xj, 0.0)
                else:
                    xm = xj
                    xs = xj
                pm = xm if pm is None else jnp.maximum(pm, xm)
                ps = xs if ps is None else ps + xs
            max_acc[...] = jnp.maximum(max_acc[...], pm)
            sum_acc[...] = sum_acc[...] + ps

        if grid_k == 1:
            fold(chunks_last, tail_valid)
        elif rem == hw_tile:
            # HW divides evenly into tiles: every step takes the unmasked path.
            fold(n_chunks, 0)
        else:
            @pl.when(k != grid_k - 1)
            def _full_steps():
                fold(n_chunks, 0)

            @pl.when(k == grid_k - 1)
            def _tail_step():
                fold(chunks_last, tail_valid)

        @pl.when(k == grid_k - 1)
        def _finalize():
            # Single cross-lane (XLU) reduce per output row tile.
            mx = jnp.max(max_acc[...], axis=-1, keepdims=True)           # (RT, 1)
            av = jnp.sum(sum_acc[...], axis=-1, keepdims=True) * inv_hw  # (RT, 1)
            # Two direct column stores (no lane-minor concat shuffle).
            o_ref[:, 0:1] = mx.astype(o_ref.dtype)
            o_ref[:, 1:2] = av.astype(o_ref.dtype)

    return kernel


def adaptive_concat_pool2d(x):
    """AdaptiveConcatPool2d(sz=1) forward. x: (N, C, H, W) -> (N, 2C, 1, 1)."""
    N, C, H, W = x.shape
    hw = H * W
    rows = N * C

    if hw < _LANE or not jnp.issubdtype(x.dtype, jnp.floating):
        # Tiny spatial maps (e.g. 7x7 heads) or non-float dtypes: plain XLA
        # reduce is at least as fast and keeps the kernel fast-path clean.
        mx = jnp.max(x, axis=(2, 3), keepdims=True)
        av = jnp.mean(x, axis=(2, 3), keepdims=True).astype(x.dtype)
        return jnp.concatenate([mx, av], axis=1)

    xr = x.reshape(rows, hw)   # contiguous view of NCHW; reduction on lanes

    row_cap, hw_cap, vmem_limit = _tile_caps()

    # HW tile: always a multiple of 128 (the boundary block is padded and the
    # padded/invalid lanes are masked in-kernel on the tail chunk only).
    hw_tile = min(hw_cap, _round_up(hw, _LANE))
    grid_k = pl.cdiv(hw, hw_tile)

    # Rows tile: split into >= 2 blocks when possible so both v7x TensorCores
    # get work on the "parallel" axis; partial last blocks are handled by
    # Pallas (padded reads, clipped writes).
    if rows <= row_cap:
        row_tile = _round_up(pl.cdiv(rows, 2), 8) if rows >= 16 else rows
    else:
        row_tile = row_cap
    grid_rows = pl.cdiv(rows, row_tile)

    kernel = _make_kernel(hw, hw_tile, grid_k)

    itemsize = jnp.dtype(x.dtype).itemsize
    cost = pl.CostEstimate(
        flops=2 * rows * hw,
        transcendentals=0,
        bytes_accessed=rows * hw * itemsize + rows * 2 * itemsize,
    )

    out = pl.pallas_call(
        kernel,
        out_shape=jax.ShapeDtypeStruct((rows, 2), x.dtype),
        grid=(grid_rows, grid_k),
        in_specs=[pl.BlockSpec((row_tile, hw_tile), lambda i, k: (i, k))],
        out_specs=pl.BlockSpec((row_tile, 2), lambda i, k: (i, 0)),
        scratch_shapes=[
            pltpu.VMEM((row_tile, _LANE), jnp.float32),   # running max
            pltpu.VMEM((row_tile, _LANE), jnp.float32),   # running sum
        ],
        compiler_params=pltpu.CompilerParams(
            dimension_semantics=("parallel", "arbitrary"),
            vmem_limit_bytes=vmem_limit,
        ),
        cost_estimate=cost,
    )(xr)

    # Tiny glue: split the (rows, 2) slab and lay out as (N, 2C, 1, 1).
    mx = out[:, 0].reshape(N, C, 1, 1)
    av = out[:, 1].reshape(N, C, 1, 1)
    return jnp.concatenate([mx, av], axis=1)


if __name__ == "__main__":
    key = jax.random.PRNGKey(0)
    x = jax.random.normal(key, (2, 4, 16, 16), dtype=jnp.float32)

    out = jax.block_until_ready(adaptive_concat_pool2d(x))

    # Reference in plain JAX (matches torch.cat([maxpool, avgpool], 1)).
    ref_max = jnp.max(x, axis=(2, 3), keepdims=True)
    ref_avg = jnp.mean(x, axis=(2, 3), keepdims=True)
    ref = jnp.concatenate([ref_max, ref_avg], axis=1)

    assert out.shape == (2, 8, 1, 1), out.shape
    assert out.dtype == x.dtype
    assert jnp.allclose(out, ref, atol=1e-5, rtol=1e-5), "mismatch vs reference"

    print("KERNEL_OK")
</pallas_src>

<mosaic_0001>
module attributes {stable_mosaic.version = 11 : i64} {
  func.func @kernel(%arg0: i32, %arg1: i32, %arg2: memref<8x256xf32, #tpu.memory_space<vmem>>, %arg3: memref<8x2xf32, #tpu.memory_space<vmem>>, %arg4: memref<8x128xf32, #tpu.memory_space<vmem>>, %arg5: memref<8x128xf32, #tpu.memory_space<vmem>>) attributes {dimension_semantics = [#tpu.dimension_semantics<parallel>, #tpu.dimension_semantics<arbitrary>], iteration_bounds = array<i64: 1, 1>, scalar_prefetch = 0 : i64, scratch_operands = 2 : i64, tpu.core_type = #tpu.core_type<tc>, window_params = [{transform_indices = @transform_0, window_bounds = array<i64: 8, 256>}, {transform_indices = @transform_1, window_bounds = array<i64: 8, 2>}]} {
    %c0_i32 = arith.constant 0 : i32
    %0 = arith.cmpi eq, %arg1, %c0_i32 : i32
    %1 = arith.extui %0 : i1 to i32
    %c0_i32_0 = arith.constant 0 : i32
    %2 = arith.cmpi ne, %1, %c0_i32_0 : i32
    scf.if %2 {
      %cst = arith.constant 0xFF800000 : f32
      %16 = vector.broadcast %cst : f32 to vector<8x128xf32>
      %c0_13 = arith.constant 0 : index
      %c0_14 = arith.constant 0 : index
      %17 = vector.load %arg4[%c0_13, %c0_14] : memref<8x128xf32, #tpu.memory_space<vmem>>, vector<8x128xf32>
      tpu.vector_store %arg4[%c0_13, %c0_14], %16 {strides = array<i32>} : memref<8x128xf32, #tpu.memory_space<vmem>>, vector<8x128xf32>,
      %cst_15 = arith.constant 0.000000e+00 : f32
      %18 = vector.broadcast %cst_15 : f32 to vector<8x128xf32>
      %c0_16 = arith.constant 0 : index
      %c0_17 = arith.constant 0 : index
      %19 = vector.load %arg5[%c0_16, %c0_17] : memref<8x128xf32, #tpu.memory_space<vmem>>, vector<8x128xf32>
      tpu.vector_store %arg5[%c0_16, %c0_17], %18 {strides = array<i32>} : memref<8x128xf32, #tpu.memory_space<vmem>>, vector<8x128xf32>,
    } else {
    }
    %c0 = arith.constant 0 : index
    %c0_1 = arith.constant 0 : index
    %3 = vector.load %arg2[%c0, %c0_1] : memref<8x256xf32, #tpu.memory_space<vmem>>, vector<8x128xf32>
    %c0_2 = arith.constant 0 : index
    %c128 = arith.constant 128 : index
    %4 = vector.load %arg2[%c0_2, %c128] : memref<8x256xf32, #tpu.memory_space<vmem>>, vector<8x128xf32>
    %5 = arith.maximumf %3, %4 : vector<8x128xf32>
    %6 = arith.addf %3, %4 : vector<8x128xf32>
    %c0_3 = arith.constant 0 : index
    %c0_4 = arith.constant 0 : index
    %7 = vector.load %arg4[%c0_3, %c0_4] : memref<8x128xf32, #tpu.memory_space<vmem>>, vector<8x128xf32>
    %8 = arith.maximumf %7, %5 : vector<8x128xf32>
    %c0_5 = arith.constant 0 : index
    %c0_6 = arith.constant 0 : index
    %9 = vector.load %arg4[%c0_5, %c0_6] : memref<8x128xf32, #tpu.memory_space<vmem>>, vector<8x128xf32>
    tpu.vector_store %arg4[%c0_5, %c0_6], %8 {strides = array<i32>} : memref<8x128xf32, #tpu.memory_space<vmem>>, vector<8x128xf32>,
    %c0_7 = arith.constant 0 : index
    %c0_8 = arith.constant 0 : index
    %10 = vector.load %arg5[%c0_7, %c0_8] : memref<8x128xf32, #tpu.memory_space<vmem>>, vector<8x128xf32>
    %11 = arith.addf %10, %6 : vector<8x128xf32>
    %c0_9 = arith.constant 0 : index
    %c0_10 = arith.constant 0 : index
    %12 = vector.load %arg5[%c0_9, %c0_10] : memref<8x128xf32, #tpu.memory_space<vmem>>, vector<8x128xf32>
    tpu.vector_store %arg5[%c0_9, %c0_10], %11 {strides = array<i32>} : memref<8x128xf32, #tpu.memory_space<vmem>>, vector<8x128xf32>,
    %c0_i32_11 = arith.constant 0 : i32
    %13 = arith.cmpi eq, %arg1, %c0_i32_11 : i32
    %14 = arith.extui %13 : i1 to i32
    %c0_i32_12 = arith.constant 0 : i32
    %15 = arith.cmpi ne, %14, %c0_i32_12 : i32
    scf.if %15 {
      %c0_13 = arith.constant 0 : index
      %c0_14 = arith.constant 0 : index
      %16 = vector.load %arg4[%c0_13, %c0_14] : memref<8x128xf32, #tpu.memory_space<vmem>>, vector<8x128xf32>
      %cst = arith.constant dense<0xFF800000> : vector<8xf32>
      %17 = vector.multi_reduction <maximumf>, %16, %cst [1] : vector<8x128xf32> to vector<8xf32>
      %18 = vector.shape_cast %17 : vector<8xf32> to vector<8x1xf32>
      %c0_15 = arith.constant 0 : index
      %c0_16 = arith.constant 0 : index
      %19 = vector.load %arg5[%c0_15, %c0_16] : memref<8x128xf32, #tpu.memory_space<vmem>>, vector<8x128xf32>
      %cst_17 = arith.constant dense<0.000000e+00> : vector<8xf32>
      %20 = vector.multi_reduction <add>, %19, %cst_17 [1] : vector<8x128xf32> to vector<8xf32>
      %21 = vector.shape_cast %20 : vector<8xf32> to vector<8x1xf32>
      %cst_18 = arith.constant 3.906250e-03 : f32
      %22 = vector.broadcast %cst_18 : f32 to vector<8x1xf32>
      %23 = arith.mulf %21, %22 : vector<8x1xf32>
      %c0_19 = arith.constant 0 : index
      %c0_20 = arith.constant 0 : index
      %24 = vector.load %arg3[%c0_19, %c0_20] : memref<8x2xf32, #tpu.memory_space<vmem>>, vector<8x1xf32>
      tpu.vector_store %arg3[%c0_19, %c0_20], %18 {strides = array<i32>} : memref<8x2xf32, #tpu.memory_space<vmem>>, vector<8x1xf32>,
      %c0_21 = arith.constant 0 : index
      %c1 = arith.constant 1 : index
      %25 = vector.load %arg3[%c0_21, %c1] : memref<8x2xf32, #tpu.memory_space<vmem>>, vector<8x1xf32>
      tpu.vector_store %arg3[%c0_21, %c1], %23 {strides = array<i32>} : memref<8x2xf32, #tpu.memory_space<vmem>>, vector<8x1xf32>,
    } else {
    }
    return
  }
  func.func @transform_0(%arg0: i32, %arg1: i32) -> (i32, i32) {
    %c0_i32 = arith.constant 0 : i32
    return %arg0, %arg1 : i32, i32
  }
  func.func @transform_1(%arg0: i32, %arg1: i32) -> (i32, i32) {
    %c0_i32 = arith.constant 0 : i32
    %c0_i32_0 = arith.constant 0 : i32
    return %arg0, %c0_i32 : i32, i32
  }
}

</mosaic_0001>

<llo_original>
// kernel: tpu_custom_call.1
$region0: #{tpu_custom_call.1}
  #allocation0 [shape = 'u32[]', space=smem, size = 0x4, offset = 0x4, fixed_abs, tag = 'smem constant byte address 0x4 - core index']
  #allocation1 [shape = 'u32[144,128]{1,0:T(1,128)}', space=vmem, size = 0x12000, scoped, tag = 'internal scratch']
  #allocation2 [shape = 'f32[8,128]{1,0:T(8,128)}', space=vmem, size = 0x1000, scoped, tag = 'scratch operand']
  #allocation3 [shape = 'f32[8,128]{1,0:T(8,128)}', space=vmem, size = 0x1000, scoped, tag = 'scratch operand']
  %s0 = inlined_call_operand.hbm [shape: f32[8,256], index: 0, kind: input, shape index: {}]
  %s1 = inlined_call_operand.vmem [shape: f32[8,2], index: 1, kind: output, shape index: {}]
  %s2 = sld [smem:[#allocation0]]
  $region26: #{tpu_custom_call.1} parent=0
    _
  %s4 = ssub.s32 1, %s2
  %s5 = scalar_select 0, %s4, %s2
  $region1: #{tpu_custom_call.1} parent=0
    #allocation4 [shape = 'u8[8192]{0}', space=vmem, size = 0x2000, scoped, tag = 'input window, operand 0, single buffered']
    #allocation5 [shape = 's32[1]{0}', space=sflag, size = 0x4, scoped, tag = 'scoped memory for tpu_custom_call.1']
    %6 = vsyncpa [#allocation5], 0
    // Predicated region
    $region2: #{tpu_custom_call.1} parent=1 // pred_check
      _
    $region3: #{tpu_custom_call.1} parent=1 // pred_check_branch
      %8 = sbr.rel (0) target = $region5
    $region4: #{tpu_custom_call.1} parent=1 // pred_region
      %s10 = ssub.s32 256, 256
      %11 = vsyncadd [#allocation5], %s10
      %s13 = sshll.u32 [#allocation4], 4
      %s14 = int_to_ptr.vmem [resolvable:$true] %s13
      %16 = dma.hbm_to_vmem [thread:$0]  %s0, 256, %s14, [#allocation5]
    $region5: #{tpu_custom_call.1} parent=1 // pred_fallthru
      _
    // Predicated region
    $region6: #{tpu_custom_call.1} parent=1 // pred_check
      _
    $region7: #{tpu_custom_call.1} parent=1 // pred_check_branch
      %18 = sbr.rel (0) target = $region9
    $region8: #{tpu_custom_call.1} parent=1 // pred_region
      %19 = dma.done [#allocation5], 256
    $region9: #{tpu_custom_call.1} parent=1 // pred_fallthru
      _
    %p20 = scmp.eq.s32.totalorder 0, 0
    // Predicated region
    $region10: #{tpu_custom_call.1} parent=1 // pred_check
      %p21 = pneg %p20
    $region11: #{tpu_custom_call.1} parent=1 // pred_check_branch
      %23 = sbr.rel (%p21) target = $region13
    $region12: #{tpu_custom_call.1} parent=1 // pred_region
      %24 = vst [vmem:[#allocation2] sm:$0xff] -inf
      %25 = vst [vmem:[#allocation3] sm:$0xff] 0.0
    $region13: #{tpu_custom_call.1} parent=1 // pred_fallthru
      _
    %v26 = vld [vmem:[#allocation4] sm:$0xff]
    %v27 = vld [vmem:[#allocation4 + $0x8] sm:$0xff]
    %v28 = vmax.f32 %v26, %v27
    %v29 = vadd.f32 %v26, %v27
    %v30 = vld [vmem:[#allocation2] sm:$0xff]
    %v31 = vmax.f32 %v30, %v28
    %32 = vst [vmem:[#allocation2] sm:$0xff] %v31
    %v33 = vld [vmem:[#allocation3] sm:$0xff]
    %v34 = vadd.f32 %v33, %v29
    %35 = vst [vmem:[#allocation3] sm:$0xff] %v34
    // Predicated region
    $region14: #{tpu_custom_call.1} parent=1 // pred_check
      %p36 = pneg %p20
    $region15: #{tpu_custom_call.1} parent=1 // pred_check_branch
      %38 = sbr.rel (%p36) target = $region17
    $region16: #{tpu_custom_call.1} parent=1 // pred_region
      %v39 = vld [vmem:[#allocation2] sm:$0xff]
      %40 = vmax.xlane.f32.xlu0 %v39
      %v41 = vpop.xlane.xlu0 %40
      %v42 = vld [vmem:[#allocation3] sm:$0xff]
      %43 = vadd.xlane.f32.xlu0 %v42
      %v44 = vpop.xlane.xlu0 %43
      %v45 = vmul.f32 %v44, 0.00390625
      %vm46 = vcmask 7168
      %47 = vst.msk [vmem:[%s1] sm:$0xff] %vm46, %v41
      %vm48 = vcmask 15368
      %49 = vst.msk [vmem:[%s1] sm:$0xff] %vm48, %v45
    $region17: #{tpu_custom_call.1} parent=1 // pred_fallthru
      _
    // Predicated region
    $region18: #{tpu_custom_call.1} parent=1 // pred_check
      _
    $region19: #{tpu_custom_call.1} parent=1 // pred_check_branch
      %51 = sbr.rel (0) target = $region21
    $region20: #{tpu_custom_call.1} parent=1 // pred_region
      _
    $region21: #{tpu_custom_call.1} parent=1 // pred_fallthru
      _
    // Predicated region
    $region22: #{tpu_custom_call.1} parent=1 // pred_check
      _
    $region23: #{tpu_custom_call.1} parent=1 // pred_check_branch
      %53 = sbr.rel (0) target = $region25
    $region24: #{tpu_custom_call.1} parent=1 // pred_region
      _
    $region25: #{tpu_custom_call.1} parent=1 // pred_fallthru
      _
    %54 = vsyncpa [#allocation5], 1

</llo_original>
